<compile_context>
chip_gen: v5e
topology: v5e:2x2
jax: 0.10.0
libtpu: 0.0.40
codegen_flags: <defaults>
</compile_context>

<pallas_src>
import jax
import jax.numpy as jnp
from jax.experimental import pallas as pl
from jax.experimental.pallas import tpu as pltpu

EPS = 1e-4
WEIGHT_NUM = 2
INIT_VAL = 1.0

_LANE_MAX = 32768            # keep the last (lane) dim a sane multiple of 128
_MIN_PALLAS_BYTES = 1 << 20  # below this a fused XLA elementwise op beats kernel dispatch


def _sublane(itemsize):
    # Sublane packing granularity per dtype (f32: 8, bf16: 16, int8/fp8: 32).
    return {4: 8, 2: 16, 1: 32}.get(itemsize, 8)


def _device_kind():
    try:
        return jax.devices()[0].device_kind.lower()
    except Exception:
        return ""


def _resident_budget_bytes(kind):
    # Double-buffered VMEM budget for all streamed arrays, per generation.
    if "v7" in kind or "tpu7" in kind:
        return 48 << 20   # v7x: 64 MiB physical VMEM -> ~8 MiB tiles for 3 arrays
    if "v6" in kind:
        return 24 << 20   # v6e: ~4 MiB tiles
    return 12 << 20       # v5e / unknown: ~2 MiB tiles (safe everywhere)


def _plan_layout(total, itemsize, target_tile_bytes):
    """Zero-copy 3-D view (g, tr, lane) of a flat array with `total` elements.

    Requires total % 128 == 0 (checked by the caller).  lane is the largest
    multiple-of-128 divisor of total (capped); tr divides total // lane, preferring
    sublane-aligned values; per-tile block is (1, tr, lane).
    """
    sub = _sublane(itemsize)
    lane_cap = min(_LANE_MAX,
                   max(128, (target_tile_bytes // (sub * itemsize)) // 128 * 128))
    m = total // 128
    d = 1
    for cand in range(min(lane_cap // 128, m), 0, -1):
        if m % cand == 0:
            d = cand
            break
    lane = 128 * d
    rows = total // lane

    if rows * lane * itemsize <= target_tile_bytes:
        return 1, rows, lane   # single full-extent block

    tr_cap = max(1, target_tile_bytes // (lane * itemsize))
    best, best_aligned = 1, None
    for t in range(1, tr_cap + 1):
        if rows % t == 0:
            best = t
            if t % sub == 0:
                best_aligned = t
    tr = best_aligned if best_aligned is not None else best
    return rows // tr, tr, lane


def _make_kernel(n):
    def kernel(pw_ref, *refs):
        # pw_ref: SMEM (n,) f32 pre-normalized weights.
        # refs[:n]: VMEM input tiles (1, tr, lane); refs[n]: output tile.
        x_refs, o_ref = refs[:n], refs[n]
        # Accumulate in f32 (matches PyTorch promotion); upcast is free -- the kernel is
        # DMA/vld-bound and VALU slots are idle.
        acc = pw_ref[0] * x_refs[0][...].astype(jnp.float32)
        for i in range(1, n):
            acc = acc + pw_ref[i] * x_refs[i][...].astype(jnp.float32)
        o_ref[...] = acc.astype(o_ref.dtype)
    return kernel


def scale_weight(weights, xs, eps=EPS, min_pallas_bytes=_MIN_PALLAS_BYTES):
    """EfficientDet ScaleWeight forward: sum_i (relu(w)/sum(relu(w)) + eps)[i] * xs[i]."""
    n = len(xs)
    assert weights.shape == (n,)
    x0 = xs[0]
    for x in xs[1:]:
        assert x.shape == x0.shape and x.dtype == x0.dtype

    orig_shape = x0.shape
    dtype = x0.dtype
    itemsize = jnp.dtype(dtype).itemsize
    total = int(x0.size)

    # Exactly the PyTorch formula: relu -> normalize -> + eps (eps added AFTER the divide).
    pw = jnp.maximum(weights.astype(jnp.float32), 0.0)
    pw = pw / pw.sum() + jnp.float32(eps)

    # Fallback: tiny BiFPN levels (7x7, 14x14) or ragged element counts.  XLA fuses this
    # trivially; avoids dispatch overhead and any padded-copy HBM round trip.
    if total % 128 != 0 or total * itemsize < min_pallas_bytes:
        acc = pw[0] * x0.astype(jnp.float32)
        for i in range(1, n):
            acc = acc + pw[i] * xs[i].astype(jnp.float32)
        return acc.astype(dtype)

    kind = _device_kind()
    target_tile_bytes = max(128 * _sublane(itemsize) * itemsize,
                            _resident_budget_bytes(kind) // (2 * (n + 1)))
    g, tr, lane = _plan_layout(total, itemsize, target_tile_bytes)
    tile_bytes = tr * lane * itemsize
    resident = 2 * (n + 1) * tile_bytes          # (n inputs + 1 output) x double buffer
    vmem_limit = int(min(max(2 * resident, 32 << 20), 56 << 20))

    if g > 1 and ("v7" in kind or "tpu7" in kind) and hasattr(pltpu, "CORE_PARALLEL"):
        # Split HBM pulls across both v7x TensorCores; plain "parallel" is enough on
        # single-TC v5e/v6e.
        dim_sem = (pltpu.CORE_PARALLEL,)
    else:
        dim_sem = ("parallel",)

    block = pl.BlockSpec((1, tr, lane), lambda i: (i, 0, 0))
    xs_3d = [x.reshape(g, tr, lane) for x in xs]   # pure reshapes: zero HBM copies

    out_3d = pl.pallas_call(
        _make_kernel(n),
        out_shape=jax.ShapeDtypeStruct((g, tr, lane), dtype),
        grid_spec=pltpu.PrefetchScalarGridSpec(
            num_scalar_prefetch=0,
            grid=(g,),
            in_specs=[pl.BlockSpec(memory_space=pltpu.MemorySpace.SMEM)]  # normalized w
                     + [block] * n,
            out_specs=block,
        ),
        compiler_params=pltpu.CompilerParams(
            dimension_semantics=dim_sem,
            vmem_limit_bytes=vmem_limit,
        ),
        cost_estimate=pl.CostEstimate(
            flops=(2 * n - 1) * total,
            transcendentals=0,
            bytes_accessed=(n + 1) * total * itemsize,
        ),
    )(pw, *xs_3d)

    return out_3d.reshape(orig_shape)


def _reference(weights, xs, eps=EPS):
    pw = jnp.maximum(weights.astype(jnp.float32), 0.0)
    pw = pw / pw.sum() + eps
    ret = 0.0
    for i in range(len(xs)):
        ret = ret + pw[i] * xs[i].astype(jnp.float32)
    return ret


if __name__ == "__main__":
    key = jax.random.PRNGKey(0)
    keys = jax.random.split(key, 8)

    # Matches nn.Parameter(torch.ones(2) * init_val).
    weights = jnp.ones((WEIGHT_NUM,), dtype=jnp.float32) * INIT_VAL

    # 1) Small canonical NCHW shape -- force the Pallas path (single full-extent block).
    shape = (2, 4, 16, 16)
    x0 = jax.random.normal(keys[0], shape, dtype=jnp.float32)
    x1 = jax.random.normal(keys[1], shape, dtype=jnp.float32)
    out = jax.block_until_ready(scale_weight(weights, [x0, x1], min_pallas_bytes=0))
    ref = _reference(weights, [x0, x1])
    assert jnp.allclose(out, ref, atol=1e-6, rtol=1e-6)

    # 2) Larger feature map: multi-tile pipelined path (grid > 1) with default heuristics.
    shape_big = (2, 64, 128, 128)
    a0 = jax.random.normal(keys[2], shape_big, dtype=jnp.float32)
    a1 = jax.random.normal(keys[3], shape_big, dtype=jnp.float32)
    out_big = jax.block_until_ready(scale_weight(weights, [a0, a1]))
    ref_big = _reference(weights, [a0, a1])
    assert jnp.allclose(out_big, ref_big, atol=1e-6, rtol=1e-6)

    # 3) bf16 inputs: kernel accumulates in f32 internally, casts back to bf16.
    shape_bf = (2, 8, 32, 32)
    b0 = jax.random.normal(keys[4], shape_bf, dtype=jnp.bfloat16)
    b1 = jax.random.normal(keys[5], shape_bf, dtype=jnp.bfloat16)
    out_bf = jax.block_until_ready(scale_weight(weights, [b0, b1], min_pallas_bytes=0))
    ref_bf = _reference(weights, [b0, b1])
    assert jnp.allclose(out_bf.astype(jnp.float32), ref_bf, atol=2e-2, rtol=2e-2)

    # 4) Awkward total (1x3x7x7 -- not a multiple of 128): fused-jnp fallback path.
    shape_odd = (1, 3, 7, 7)
    c0 = jax.random.normal(keys[6], shape_odd, dtype=jnp.float32)
    c1 = jax.random.normal(keys[7], shape_odd, dtype=jnp.float32)
    out_odd = jax.block_until_ready(scale_weight(weights, [c0, c1]))
    ref_odd = _reference(weights, [c0, c1])
    assert jnp.allclose(out_odd, ref_odd, atol=1e-6, rtol=1e-6)

    print("KERNEL_OK")
</pallas_src>

<mosaic_0001>
module attributes {stable_mosaic.version = 11 : i64} {
  func.func @kernel(%arg0: i32, %arg1: memref<2xf32, #tpu.memory_space<smem>>, %arg2: memref<1x1x2048xf32, #tpu.memory_space<vmem>>, %arg3: memref<1x1x2048xf32, #tpu.memory_space<vmem>>, %arg4: memref<1x1x2048xf32, #tpu.memory_space<vmem>>) attributes {dimension_semantics = [#tpu.dimension_semantics<parallel>], iteration_bounds = array<i64: 1>, scalar_prefetch = 0 : i64, scratch_operands = 0 : i64, tpu.core_type = #tpu.core_type<tc>, window_params = [{transform_indices = @transform_0, window_bounds = array<i64: 2>}, {transform_indices = @transform_1, window_bounds = array<i64: 1, 1, 2048>}, {transform_indices = @transform_2, window_bounds = array<i64: 1, 1, 2048>}, {transform_indices = @transform_3, window_bounds = array<i64: 1, 1, 2048>}]} {
    %c0 = arith.constant 0 : index
    %0 = memref.load %arg1[%c0] : memref<2xf32, #tpu.memory_space<smem>>
    %c0_0 = arith.constant 0 : index
    %c0_1 = arith.constant 0 : index
    %c0_2 = arith.constant 0 : index
    %1 = vector.load %arg2[%c0_0, %c0_1, %c0_2] : memref<1x1x2048xf32, #tpu.memory_space<vmem>>, vector<1x1x2048xf32>
    %2 = vector.broadcast %0 : f32 to vector<1x1x2048xf32>
    %3 = arith.mulf %2, %1 : vector<1x1x2048xf32>
    %c1 = arith.constant 1 : index
    %4 = memref.load %arg1[%c1] : memref<2xf32, #tpu.memory_space<smem>>
    %c0_3 = arith.constant 0 : index
    %c0_4 = arith.constant 0 : index
    %c0_5 = arith.constant 0 : index
    %5 = vector.load %arg3[%c0_3, %c0_4, %c0_5] : memref<1x1x2048xf32, #tpu.memory_space<vmem>>, vector<1x1x2048xf32>
    %6 = vector.broadcast %4 : f32 to vector<1x1x2048xf32>
    %7 = arith.mulf %6, %5 : vector<1x1x2048xf32>
    %8 = arith.addf %3, %7 : vector<1x1x2048xf32>
    %c0_6 = arith.constant 0 : index
    %c0_7 = arith.constant 0 : index
    %c0_8 = arith.constant 0 : index
    %9 = vector.load %arg4[%c0_6, %c0_7, %c0_8] : memref<1x1x2048xf32, #tpu.memory_space<vmem>>, vector<1x1x2048xf32>
    tpu.vector_store %arg4[%c0_6, %c0_7, %c0_8], %8 {strides = array<i32>} : memref<1x1x2048xf32, #tpu.memory_space<vmem>>, vector<1x1x2048xf32>,
    return
  }
  func.func @transform_0(%arg0: i32) -> i32 {
    %c0_i32 = arith.constant 0 : i32
    %c0_i32_0 = arith.constant 0 : i32
    return %c0_i32 : i32
  }
  func.func @transform_1(%arg0: i32) -> (i32, i32, i32) {
    %c0_i32 = arith.constant 0 : i32
    %c0_i32_0 = arith.constant 0 : i32
    %c0_i32_1 = arith.constant 0 : i32
    return %arg0, %c0_i32, %c0_i32_0 : i32, i32, i32
  }
  func.func @transform_2(%arg0: i32) -> (i32, i32, i32) {
    %c0_i32 = arith.constant 0 : i32
    %c0_i32_0 = arith.constant 0 : i32
    %c0_i32_1 = arith.constant 0 : i32
    return %arg0, %c0_i32, %c0_i32_0 : i32, i32, i32
  }
  func.func @transform_3(%arg0: i32) -> (i32, i32, i32) {
    %c0_i32 = arith.constant 0 : i32
    %c0_i32_0 = arith.constant 0 : i32
    %c0_i32_1 = arith.constant 0 : i32
    return %arg0, %c0_i32, %c0_i32_0 : i32, i32, i32
  }
}

</mosaic_0001>

<llo_original>
// kernel: tpu_custom_call.1
$region0: #{tpu_custom_call.1}
  #allocation0 [shape = 'u32[]', space=smem, size = 0x4, offset = 0x4, fixed_abs, tag = 'smem constant byte address 0x4 - core index']
  #allocation1 [shape = 'u32[72,128]{1,0:T(1,128)}', space=vmem, size = 0x9000, scoped, tag = 'internal scratch']
  %s0 = inlined_call_operand.hbm [shape: f32[2], index: 0, kind: input, shape index: {}]
  %s1 = inlined_call_operand.hbm [shape: f32[1,1,2048], index: 1, kind: input, shape index: {}]
  %s2 = inlined_call_operand.hbm [shape: f32[1,1,2048], index: 2, kind: input, shape index: {}]
  %s3 = inlined_call_operand.hbm [shape: f32[1,1,2048], index: 3, kind: output, shape index: {}]
  %s4 = sld [smem:[#allocation0]]
  $region34: #{tpu_custom_call.1} parent=0
    _
  %s6 = ssub.s32 1, %s4
  %s7 = scalar_select 0, %s6, %s4
  $region1: #{tpu_custom_call.1} parent=0
    #allocation2 [shape = 'u8[512]{0}', space=smem, size = 0x200, scoped, tag = 'input window, operand 0, single buffered']
    #allocation3 [shape = 's32[1]{0}', space=sflag, size = 0x4, scoped, tag = 'scoped memory for tpu_custom_call.1']
    #allocation4 [shape = 's32[1]{0}', space=sflag, size = 0x4, scoped, tag = 'scoped memory for tpu_custom_call.1']
    #allocation5 [shape = 's32[1]{0}', space=sflag, size = 0x4, scoped, tag = 'scoped memory for tpu_custom_call.1']
    #allocation6 [shape = 'u8[8192]{0}', space=vmem, size = 0x2000, scoped, tag = 'input window, operand 1, single buffered']
    #allocation7 [shape = 'u8[8192]{0}', space=vmem, size = 0x2000, scoped, tag = 'input window, operand 2, single buffered']
    #allocation8 [shape = 's32[1]{0}', space=sflag, size = 0x4, scoped, tag = 'scoped memory for tpu_custom_call.1']
    #allocation9 [shape = 'u8[8192]{0}', space=vmem, size = 0x2000, scoped, tag = 'output window, operand 0, single buffered']
    %8 = vsyncpa [#allocation5], 0
    %9 = vsyncpa [#allocation3], 0
    %10 = vsyncpa [#allocation8], 0
    %11 = vsyncpa [#allocation4], 0
    // Predicated region
    $region2: #{tpu_custom_call.1} parent=1 // pred_check
      _
    $region3: #{tpu_custom_call.1} parent=1 // pred_check_branch
      %13 = sbr.rel (0) target = $region5
    $region4: #{tpu_custom_call.1} parent=1 // pred_region
      %15 = vsyncadd [#allocation5], 0
      %s17 = sshll.u32 %s0, 4
      %s18 = int_to_ptr.hbm [resolvable:$true] %s17
      %20 = dma.hbm_to_smem %s18, 16, [#allocation2], [#allocation5]
    $region5: #{tpu_custom_call.1} parent=1 // pred_fallthru
      _
    // Predicated region
    $region6: #{tpu_custom_call.1} parent=1 // pred_check
      _
    $region7: #{tpu_custom_call.1} parent=1 // pred_check_branch
      %22 = sbr.rel (0) target = $region9
    $region8: #{tpu_custom_call.1} parent=1 // pred_region
      %24 = vsyncadd [#allocation3], 0
      %s26 = sshll.u32 %s1, 4
      %s27 = int_to_ptr.hbm [resolvable:$true] %s26
      %s28 = sshll.u32 [#allocation6], 4
      %s29 = int_to_ptr.vmem [resolvable:$true] %s28
      %31 = dma.hbm_to_vmem [thread:$0]  %s27, 256, %s29, [#allocation3]
    $region9: #{tpu_custom_call.1} parent=1 // pred_fallthru
      _
    // Predicated region
    $region10: #{tpu_custom_call.1} parent=1 // pred_check
      _
    $region11: #{tpu_custom_call.1} parent=1 // pred_check_branch
      %33 = sbr.rel (0) target = $region13
    $region12: #{tpu_custom_call.1} parent=1 // pred_region
      %35 = vsyncadd [#allocation8], 0
      %s37 = sshll.u32 %s2, 4
      %s38 = int_to_ptr.hbm [resolvable:$true] %s37
      %s39 = sshll.u32 [#allocation7], 4
      %s40 = int_to_ptr.vmem [resolvable:$true] %s39
      %42 = dma.hbm_to_vmem [thread:$0]  %s38, 256, %s40, [#allocation8]
    $region13: #{tpu_custom_call.1} parent=1 // pred_fallthru
      _
    // Predicated region
    $region14: #{tpu_custom_call.1} parent=1 // pred_check
      _
    $region15: #{tpu_custom_call.1} parent=1 // pred_check_branch
      %44 = sbr.rel (0) target = $region17
    $region16: #{tpu_custom_call.1} parent=1 // pred_region
      %46 = dma.done [#allocation5], 16
    $region17: #{tpu_custom_call.1} parent=1 // pred_fallthru
      _
    // Predicated region
    $region18: #{tpu_custom_call.1} parent=1 // pred_check
      _
    $region19: #{tpu_custom_call.1} parent=1 // pred_check_branch
      %48 = sbr.rel (0) target = $region21
    $region20: #{tpu_custom_call.1} parent=1 // pred_region
      %50 = dma.done [#allocation3], 256
    $region21: #{tpu_custom_call.1} parent=1 // pred_fallthru
      _
    // Predicated region
    $region22: #{tpu_custom_call.1} parent=1 // pred_check
      _
    $region23: #{tpu_custom_call.1} parent=1 // pred_check_branch
      %52 = sbr.rel (0) target = $region25
    $region24: #{tpu_custom_call.1} parent=1 // pred_region
      %54 = dma.done [#allocation8], 256
    $region25: #{tpu_custom_call.1} parent=1 // pred_fallthru
      _
    %55 = sfence
    %s56 = sld [smem:[#allocation2]]
    %v57 = vld [vmem:[#allocation6] sm:$0xff]
    %v58 = vld [vmem:[#allocation6 + $0x8] sm:$0xff]
    %v59 = vstv %s56
    %v60 = vmul.f32 %v59, %v57
    %v61 = vmul.f32 %v59, %v58
    %s62 = sld [smem:[#allocation2 + $0x1]]
    %v63 = vld [vmem:[#allocation7] sm:$0xff]
    %v64 = vld [vmem:[#allocation7 + $0x8] sm:$0xff]
    %v65 = vstv %s62
    %v66 = vmul.f32 %v65, %v63
    %v67 = vmul.f32 %v65, %v64
    %v68 = vadd.f32 %v60, %v66
    %v69 = vadd.f32 %v61, %v67
    %70 = vst [vmem:[#allocation9] sm:$0xff] %v68
    %71 = vst [vmem:[#allocation9 + $0x8] sm:$0xff] %v69
    // Predicated region
    $region26: #{tpu_custom_call.1} parent=1 // pred_check
      _
    $region27: #{tpu_custom_call.1} parent=1 // pred_check_branch
      %73 = sbr.rel (0) target = $region29
    $region28: #{tpu_custom_call.1} parent=1 // pred_region
      %75 = vsyncadd [#allocation4], 0
      %s77 = sshll.u32 [#allocation9], 4
      %s78 = int_to_ptr.vmem [resolvable:$true] %s77
      %s79 = sshll.u32 %s3, 4
      %s80 = int_to_ptr.hbm [resolvable:$true] %s79
      %82 = dma.vmem_to_hbm [thread:$0]  %s78, 256, %s80, [#allocation4]
    $region29: #{tpu_custom_call.1} parent=1 // pred_fallthru
      _
    // Predicated region
    $region30: #{tpu_custom_call.1} parent=1 // pred_check
      _
    $region31: #{tpu_custom_call.1} parent=1 // pred_check_branch
      %84 = sbr.rel (0) target = $region33
    $region32: #{tpu_custom_call.1} parent=1 // pred_region
      %86 = dma.done [#allocation4], 256
    $region33: #{tpu_custom_call.1} parent=1 // pred_fallthru
      _
    %87 = vsyncpa [#allocation3], 1
    %88 = vsyncpa [#allocation8], 1
    %89 = vsyncpa [#allocation4], 1
    %90 = vsyncpa [#allocation5], 1

</llo_original>
